<compile_context>
chip_gen: v6e
topology: v6e:2x2x1
jax: 0.10.0
libtpu: 0.0.40
codegen_flags: <defaults>
</compile_context>

<pallas_src>
import jax
import jax.numpy as jnp
from jax.experimental import pallas as pl
from jax.experimental.pallas import tpu as pltpu


def _rand_like_kernel(seed_ref, o_ref):
    """seed_ref: i32[1] in SMEM; o_ref: f32 output block (full array)."""
    shape = o_ref.shape

    # Per-element counter (2-D iota is required on TPU; 1-D iota is not).
    rows = jax.lax.broadcasted_iota(jnp.int32, shape, 0)
    cols = jax.lax.broadcasted_iota(jnp.int32, shape, 1)
    lin = rows * jnp.int32(shape[1]) + cols

    # Mix the seed in with a golden-ratio multiplier (int32 wraps, intended).
    # -1640531527 == int32 view of 0x9E3779B9, -1028477387 == 0xC2B2AE35.
    offset = seed_ref[0] * jnp.int32(-1640531527) + jnp.int32(-1028477387)
    x = jax.lax.bitcast_convert_type(lin + offset, jnp.uint32)

    # Murmur-style avalanche finalizer -> well-mixed 32 random bits.
    x = (x ^ (x >> 16)) * jnp.uint32(0x7FEB352D)
    x = (x ^ (x >> 15)) * jnp.uint32(0x846CA68B)
    x = x ^ (x >> 16)

    # Mantissa trick: top 23 bits into [1, 2), subtract 1 -> uniform [0, 1).
    mant = (x >> 9) | jnp.uint32(0x3F800000)
    o_ref[...] = jax.lax.bitcast_convert_type(mant, jnp.float32) - jnp.float32(1.0)


def model_forward(x1, p1, seed):
    """Matches Model.forward: returns rand_like(x1 + p1).

    x1: f32[6, 6], p1: f32[1], seed: i32[1].
    x1 + p1 only contributes its shape/dtype, so x1 and p1 are not DMA'd
    into the kernel (dead-input elimination per perf review).
    """
    del p1  # value never reaches the output
    out_shape = jax.ShapeDtypeStruct(x1.shape, jnp.float32)
    return pl.pallas_call(
        _rand_like_kernel,
        out_shape=out_shape,
        in_specs=[pl.BlockSpec(memory_space=pltpu.MemorySpace.SMEM)],  # seed
        out_specs=pl.BlockSpec(x1.shape, lambda: (0, 0)),              # full block
    )(seed)


if __name__ == "__main__":
    key = jax.random.PRNGKey(0)
    # Shapes implied by the module: x1 = randn(6, 6), p1 = tensor([2.0])
    x1 = jax.random.normal(key, (6, 6), dtype=jnp.float32)
    p1 = jnp.array([2.0], dtype=jnp.float32)
    seed = jnp.array([0], dtype=jnp.int32)

    out = jax.block_until_ready(model_forward(x1, p1, seed))
    assert out.shape == (6, 6) and out.dtype == jnp.float32
    assert bool(jnp.all(out >= 0.0)) and bool(jnp.all(out < 1.0))

    # Different seed -> different draw (caller advances seed per call, since
    # torch.rand_like's implicit global RNG state has no kernel equivalent).
    out2 = jax.block_until_ready(
        model_forward(x1, p1, jnp.array([1], dtype=jnp.int32)))
    assert not bool(jnp.all(out == out2))

    print("KERNEL_OK")
</pallas_src>

<mosaic_0001>
module attributes {stable_mosaic.version = 11 : i64} {
  func.func @_rand_like_kernel(%arg0: memref<1xi32, #tpu.memory_space<smem>>, %arg1: memref<6x6xf32, #tpu.memory_space<vmem>>) attributes {dimension_semantics = [], scalar_prefetch = 0 : i64, scratch_operands = 0 : i64, tpu.core_type = #tpu.core_type<tc>} {
    %0 = tpu.iota {dimensions = array<i32: 0>} : vector<6x6xi32>
    %1 = tpu.iota {dimensions = array<i32: 1>} : vector<6x6xi32>
    %c6_i32 = arith.constant 6 : i32
    %2 = vector.broadcast %c6_i32 : i32 to vector<6x6xi32>
    %3 = arith.muli %0, %2 : vector<6x6xi32>
    %4 = arith.addi %3, %1 : vector<6x6xi32>
    %c0 = arith.constant 0 : index
    %5 = memref.load %arg0[%c0] : memref<1xi32, #tpu.memory_space<smem>>
    %c-1640531527_i32 = arith.constant -1640531527 : i32
    %6 = arith.muli %5, %c-1640531527_i32 : i32
    %c-1028477387_i32 = arith.constant -1028477387 : i32
    %7 = arith.addi %6, %c-1028477387_i32 : i32
    %8 = vector.broadcast %7 : i32 to vector<6x6xi32>
    %9 = arith.addi %4, %8 : vector<6x6xi32>
    %10 = tpu.bitcast %9 : vector<6x6xi32> -> vector<6x6xi32>
    %c16_i32 = arith.constant 16 : i32
    %11 = vector.broadcast %c16_i32 : i32 to vector<6x6xi32>
    %12 = arith.shrui %10, %11 : vector<6x6xi32>
    %13 = arith.xori %10, %12 : vector<6x6xi32>
    %c2146121005_i32 = arith.constant 2146121005 : i32
    %14 = vector.broadcast %c2146121005_i32 : i32 to vector<6x6xi32>
    %15 = arith.muli %13, %14 : vector<6x6xi32>
    %c15_i32 = arith.constant 15 : i32
    %16 = vector.broadcast %c15_i32 : i32 to vector<6x6xi32>
    %17 = arith.shrui %15, %16 : vector<6x6xi32>
    %18 = arith.xori %15, %17 : vector<6x6xi32>
    %c-2073254261_i32 = arith.constant -2073254261 : i32
    %19 = vector.broadcast %c-2073254261_i32 : i32 to vector<6x6xi32>
    %20 = arith.muli %18, %19 : vector<6x6xi32>
    %c16_i32_0 = arith.constant 16 : i32
    %21 = vector.broadcast %c16_i32_0 : i32 to vector<6x6xi32>
    %22 = arith.shrui %20, %21 : vector<6x6xi32>
    %23 = arith.xori %20, %22 : vector<6x6xi32>
    %c9_i32 = arith.constant 9 : i32
    %24 = vector.broadcast %c9_i32 : i32 to vector<6x6xi32>
    %25 = arith.shrui %23, %24 : vector<6x6xi32>
    %c1065353216_i32 = arith.constant 1065353216 : i32
    %26 = vector.broadcast %c1065353216_i32 : i32 to vector<6x6xi32>
    %27 = arith.ori %25, %26 : vector<6x6xi32>
    %28 = tpu.bitcast %27 : vector<6x6xi32> -> vector<6x6xf32>
    %cst = arith.constant 1.000000e+00 : f32
    %29 = vector.broadcast %cst : f32 to vector<6x6xf32>
    %30 = arith.subf %28, %29 : vector<6x6xf32>
    %c0_1 = arith.constant 0 : index
    %c0_2 = arith.constant 0 : index
    %31 = vector.load %arg1[%c0_1, %c0_2] : memref<6x6xf32, #tpu.memory_space<vmem>>, vector<6x6xf32>
    tpu.vector_store %arg1[%c0_1, %c0_2], %30 {strides = array<i32>} : memref<6x6xf32, #tpu.memory_space<vmem>>, vector<6x6xf32>,
    return
  }
}

</mosaic_0001>

<llo_original>
// kernel: tpu_custom_call.1
$region0: #{tpu_custom_call.1}
  #allocation0 [shape = 'u32[]', space=smem, size = 0x4, offset = 0x4, fixed_abs, tag = 'smem constant byte address 0x4 - core index']
  #allocation1 [shape = 'u32[144,128]{1,0:T(1,128)}', space=vmem, size = 0x12000, scoped, tag = 'internal scratch']
  #allocation2 [shape = 's32[1]{0:T(128)S(6)}', space=smem, size = 0x200, scoped, tag = 'scoped memory for tpu_custom_call.1']
  %s0 = inlined_call_operand.<no memory space> [shape: s32[1], index: 0, kind: input, shape index: {}]
  %s1 = inlined_call_operand.hbm [shape: f32[6,6], index: 1, kind: output, shape index: {}]
  %s2 = sld [smem:[#allocation0]]
  $region14: #{tpu_custom_call.1} parent=0
    _
  %s4 = ssub.s32 1, %s2
  %s5 = scalar_select 0, %s4, %s2
  %6 = sst [smem:[#allocation2]] %s0
  $region1: #{tpu_custom_call.1} parent=0
    #allocation3 [shape = 'u8[4096]{0}', space=vmem, size = 0x1000, scoped, tag = 'output window, operand 0, single buffered']
    #allocation4 [shape = 's32[1]{0}', space=sflag, size = 0x4, scoped, tag = 'scoped memory for tpu_custom_call.1']
    %7 = vsyncpa [#allocation4], 0
    // Predicated region
    $region2: #{tpu_custom_call.1} parent=1 // pred_check
      _
    $region3: #{tpu_custom_call.1} parent=1 // pred_check_branch
      %9 = sbr.rel (0) target = $region5
    $region4: #{tpu_custom_call.1} parent=1 // pred_region
      _
    $region5: #{tpu_custom_call.1} parent=1 // pred_fallthru
      _
    %v10 = vlaneseq
    %v11 = vshrl.u32 %v10, 7
    %v12 = vlaneseq
    %v13 = vand.u32 %v12, 127
    %v14 = vmul.u32 %v11, 6
    %v15 = vadd.s32 %v14, %v13
    %s16 = sld [smem:[#allocation2]]
    %s17 = smul.u32 %s16, 2654435769
    %s18 = sadd.s32 %s17, 3266489909
    %v19 = vstv %s18
    %v20 = vadd.s32 %v15, %v19
    %v21 = vshrl.u32 %v20, 16
    %v22 = vxor.u32 %v20, %v21
    %v23 = vmul.u32 %v22, 2146121005
    %v24 = vshrl.u32 %v23, 15
    %v25 = vxor.u32 %v23, %v24
    %v26 = vmul.u32 %v25, 2221713035
    %v27 = vshrl.u32 %v26, 16
    %v28 = vxor.u32 %v26, %v27
    %v29 = vshrl.u32 %v28, 9
    %v30 = vor.u32 %v29, 1065353216
    %v32 = vsub.f32 %v30, 1.0
    %vm33 = vcmask 46080
    %34 = vst.msk [vmem:[#allocation3] sm:$0x3f] %vm33, %v32
    // Predicated region
    $region6: #{tpu_custom_call.1} parent=1 // pred_check
      _
    $region7: #{tpu_custom_call.1} parent=1 // pred_check_branch
      %36 = sbr.rel (0) target = $region9
    $region8: #{tpu_custom_call.1} parent=1 // pred_region
      %s38 = ssub.s32 128, 128
      %39 = vsyncadd [#allocation4], %s38
      %s41 = sshll.u32 [#allocation3], 4
      %s42 = int_to_ptr.vmem [resolvable:$true] %s41
      %44 = dma.vmem_to_hbm [thread:$0]  %s42, 128, %s1, [#allocation4]
    $region9: #{tpu_custom_call.1} parent=1 // pred_fallthru
      _
    // Predicated region
    $region10: #{tpu_custom_call.1} parent=1 // pred_check
      _
    $region11: #{tpu_custom_call.1} parent=1 // pred_check_branch
      %46 = sbr.rel (0) target = $region13
    $region12: #{tpu_custom_call.1} parent=1 // pred_region
      %47 = dma.done [#allocation4], 128
    $region13: #{tpu_custom_call.1} parent=1 // pred_fallthru
      _
    %48 = vsyncpa [#allocation4], 1

</llo_original>
